<compile_context>
chip_gen: v5e
topology: v5e:2x2
jax: 0.10.0
libtpu: 0.0.40
codegen_flags: <defaults>
</compile_context>

<pallas_src>
import functools
import math

import jax
import jax.numpy as jnp
from jax.experimental import pallas as pl
from jax.experimental.pallas import tpu as pltpu

# ---- module-level constants from the PyTorch script -------------------------
Vdd = 1.0
P_ADCS = 7                    # p
Q_BITS = 4                    # q_bits
Vr = Vdd / 2 ** Q_BITS
Vref = Vr
NOISE_SIGMA = 0.3             # PyTorch uses std = noise_sigma ** 0.5 (as-is)
NOISY_TRAINING = True
ANALOG_LENGTH = 784           # AnalogLayer.length (28*28 MNIST)
A_PAD = 8                     # ADC axis padded to one full sublane group
BN_EPS = 1e-5
HI = jax.lax.Precision.HIGHEST


# ============================================================================
# Pallas kernel: fused AGC affine + SAR-ADC successive-approximation quantizer
# ============================================================================
def _agc_quant_kernel(y_ref, scale_ref, shift_ref, wvref_ref, wvr_ref,
                      vin_ref, q_ref, qbits_ref, *, num_of_bits):
    """One L-tile.

    y_ref:     [A_PAD, TL]  pre-AGC analog outputs (ADC on sublanes, batch on
                            lanes)
    scale_ref: [A_PAD, 1]   fused AGC scale  = gamma * rsqrt(var+eps) * Vdd/2
    shift_ref: [A_PAD, 1]   fused AGC shift  = (beta - mean*gamma*rsqrt + 1)*Vdd/2
    wvref_ref: [NW]  SMEM   noisy comparator weights * Vref
    wvr_ref:   [NW]  SMEM   noisy comparator weights * Vr
    vin_ref:   [A_PAD, TL]  AGC output (quantizer input), f32
    q_ref:     [A_PAD, TL]  reconstructed quantized value, f32
    qbits_ref: [num_of_bits*A_PAD, TL]  int8 bit planes (plane-major, +/-1)
    """
    # Fused AGC: BatchNorm1d (train-mode batch stats, folded to an affine by
    # the wrapper) followed by (x + 1) * Vdd / 2.
    x = y_ref[...] * scale_ref[...] + shift_ref[...]
    vin_ref[...] = x

    nw = wvref_ref.shape[0]
    bits = [None] * num_of_bits        # 0/1 f32 bits, MSB computed first
    m = nw - 1
    for j in reversed(range(num_of_bits)):
        bit_sum = wvref_ref[m]                         # SMEM scalar -> sreg splat
        m -= 1
        for k in range(j + 1, num_of_bits):
            bit_sum = bit_sum + bits[k] * wvr_ref[m]   # scalar * [A_PAD, TL]
            m -= 1
        # PyTorch computes tanh(1e4*(x - bit_sum + 1e-30)), which saturates to
        # sign() in f32; expressed as a compare (ties -> +1) so it stays exact.
        bits[j] = (x >= bit_sum).astype(jnp.float32)

    # q = sum_b bit_b * Vr * 2^b  (exact power-of-two scalings).
    q = bits[num_of_bits - 1] * (Vr * 2.0 ** (num_of_bits - 1))
    for b in reversed(range(num_of_bits - 1)):
        q = q + bits[b] * (Vr * 2.0 ** b)
    q_ref[...] = q

    # +/-1 bit planes, packed as one (num_of_bits*A_PAD, TL) int8 slab and
    # stored with a single full-width write (bits stay live for q anyway, so
    # deferring the store adds no vreg pressure).
    qbits_ref[...] = (jnp.concatenate(bits, axis=0) * 2.0 - 1.0).astype(jnp.int8)


# ---- wrapper: layout plumbing + pallas_call ---------------------------------
def fused_agc_quantization(y_pn, scale, shift, w_vref, w_vr, *,
                           num_of_bits=Q_BITS, tile_l=512):
    """Runs the fused AGC + quantizer kernel.

    y_pn:  [A_PAD, N] pre-AGC analog outputs (kernel-native orientation)
    scale, shift: [A_PAD, 1] fused AGC affine
    w_vref, w_vr: [NW] scalarized noisy comparator weights (times Vref / Vr)

    Returns (vin [A_PAD, L_pad] f32, q [A_PAD, L_pad] f32,
             qbits [num_of_bits*A_PAD, L_pad] int8), kernel-native layout.
    """
    n = y_pn.shape[1]
    tile_l = max(128, (min(tile_l, 512) // 128) * 128)   # <=512 lanes, x128
    lanes = pl.cdiv(n, 128) * 128
    tile_l = min(tile_l, lanes)
    l_pad = pl.cdiv(lanes, tile_l) * tile_l
    if l_pad != n:
        y_pn = jnp.pad(y_pn, ((0, 0), (0, l_pad - n)))

    grid = (l_pad // tile_l,)
    kernel = functools.partial(_agc_quant_kernel, num_of_bits=num_of_bits)

    vin_pn, q_pn, qbits = pl.pallas_call(
        kernel,
        out_shape=(
            jax.ShapeDtypeStruct((A_PAD, l_pad), jnp.float32),
            jax.ShapeDtypeStruct((A_PAD, l_pad), jnp.float32),
            jax.ShapeDtypeStruct((num_of_bits * A_PAD, l_pad), jnp.int8),
        ),
        grid=grid,
        in_specs=[
            pl.BlockSpec((A_PAD, tile_l), lambda i: (0, i)),        # y
            pl.BlockSpec((A_PAD, 1), lambda i: (0, 0)),             # scale
            pl.BlockSpec((A_PAD, 1), lambda i: (0, 0)),             # shift
            pl.BlockSpec(memory_space=pltpu.MemorySpace.SMEM),      # w * Vref
            pl.BlockSpec(memory_space=pltpu.MemorySpace.SMEM),      # w * Vr
        ],
        out_specs=(
            pl.BlockSpec((A_PAD, tile_l), lambda i: (0, i)),
            pl.BlockSpec((A_PAD, tile_l), lambda i: (0, i)),
            pl.BlockSpec((num_of_bits * A_PAD, tile_l), lambda i: (0, i)),
        ),
        compiler_params=pltpu.CompilerParams(
            dimension_semantics=("parallel",)),
    )(y_pn, scale, shift, w_vref, w_vr)
    return vin_pn, q_pn, qbits


# ============================================================================
# Rest of FullNet: tiny ops, left to plain JAX/XLA.
# ============================================================================
def matrix2vector(w_mat):
    """PyTorch matrix2vector: non-zero entries, rows forward / columns
    reversed, as a column vector [NW, 1]."""
    n = len(w_mat)
    vals = [w_mat[i][j] for i in range(n) for j in reversed(range(n))
            if w_mat[i][j] != 0]
    return jnp.asarray(vals, jnp.float32).reshape(-1, 1)


def _build_w_init(num_of_bits):
    w = [[0.0] * num_of_bits for _ in range(num_of_bits)]
    for i in range(num_of_bits):
        w[i][0] = 2.0 ** i
        for j in range(num_of_bits):
            if j > i:
                w[i][j] = 2.0 ** j
    return w


def init_fullnet_params(key, num_of_bits=Q_BITS, num_of_adcs=P_ADCS,
                        length=ANALOG_LENGTH):
    k_phi, k_l1w, k_l1b, k_l2w, k_l2b = jax.random.split(key, 5)
    # AnalogLayer
    phi = jax.random.normal(k_phi, (length, num_of_adcs), jnp.float32)
    weights = jnp.sqrt(jnp.concatenate([
        jnp.full((1,), 1.0 / length, jnp.float32),
        jnp.full((length - 1,), 2.0 / length, jnp.float32)]))
    a_mat = jnp.broadcast_to(weights[:, None], (length, num_of_adcs))
    # QuantizationLayer weights (same construction as the PyTorch __init__)
    w_tensor = matrix2vector(_build_w_init(num_of_bits))          # [10, 1]
    # AGC (BatchNorm1d affine params, default init)
    bn_gamma = jnp.ones((num_of_adcs,), jnp.float32)
    bn_beta = jnp.zeros((num_of_adcs,), jnp.float32)
    # digitalDNN
    h = num_of_adcs * 2
    b1 = 1.0 / math.sqrt(num_of_adcs)
    b2 = 1.0 / math.sqrt(h)
    l1_w = jax.random.uniform(k_l1w, (h, num_of_adcs), jnp.float32, -b1, b1)
    l1_b = jax.random.uniform(k_l1b, (h,), jnp.float32, -b1, b1)
    l2_w = jax.random.uniform(k_l2w, (1, h), jnp.float32, -b2, b2)
    l2_b = jax.random.uniform(k_l2b, (1,), jnp.float32, -b2, b2)
    return dict(phi=phi, a_mat=a_mat, w_tensor=w_tensor,
                bn_gamma=bn_gamma, bn_beta=bn_beta,
                l1_w=l1_w, l1_b=l1_b, l2_w=l2_w, l2_b=l2_b)


def full_net_forward(x, params, noise_key, *, tile_l=512):
    """FullNet.forward.  x: [N, 784].

    Returns (y [N,1], Q_native, Vin_native, W_noisy), with the big tensors in
    the kernel-native lane-dense layout (no hot-path transposes):
        Q_native:   [Q_BITS*A_PAD, L_pad] int8  (plane-major, values +/-1)
        Vin_native: [A_PAD, L_pad]        f32   (rows >= P_ADCS are padding)
    """
    n = x.shape[0]
    x = x.astype(jnp.float32)
    length = ANALOG_LENGTH

    # ---- AnalogLayer, directly in [p, N] orientation; ADC axis padded 7->8
    # via a zero weight column (no activation-side pad/transpose ops).
    cos_arg = ((math.pi / length)
               * (jnp.arange(P_ADCS, dtype=jnp.float32)[None, :] + 0.5)
               * jnp.arange(length, dtype=jnp.float32)[:, None]
               + params["phi"])
    w_analog = jnp.pad(params["a_mat"] * jnp.cos(cos_arg),
                       ((0, 0), (0, A_PAD - P_ADCS)))           # [784, 8]
    y_pn = jnp.einsum("lp,nl->pn", w_analog, x, precision=HI)   # [8, N]

    # ---- AGC (BatchNorm1d, biased train-mode batch stats) folded to a per-ADC
    # affine and applied inside the Pallas kernel.
    # TODO(synk): eval-mode running statistics are not modeled (forward-only).
    mean = jnp.mean(y_pn, axis=1, keepdims=True)                 # [8, 1]
    var = jnp.var(y_pn, axis=1, keepdims=True)                   # biased, as torch
    gamma = jnp.pad(params["bn_gamma"], (0, A_PAD - P_ADCS),
                    constant_values=1.0)[:, None]
    beta = jnp.pad(params["bn_beta"], (0, A_PAD - P_ADCS))[:, None]
    g_rstd = gamma * jax.lax.rsqrt(var + BN_EPS)
    scale = g_rstd * (Vdd / 2.0)                                 # [8, 1]
    shift = (beta - mean * g_rstd + 1.0) * (Vdd / 2.0)           # [8, 1]

    # ---- QuantizationLayer weight noise (glue) + scalarized weights.
    w_tensor = params["w_tensor"].astype(jnp.float32)            # [NW, 1]
    if NOISY_TRAINING:
        noise = (jax.random.normal(noise_key, w_tensor.shape, w_tensor.dtype)
                 * NOISE_SIGMA ** 0.5)      # matches the PyTorch code verbatim
        w_noisy = w_tensor + noise
    else:
        w_noisy = w_tensor
    w_vref = w_noisy[:, 0] * Vref                                # [NW]
    w_vr = w_noisy[:, 0] * Vr                                    # [NW]

    vin_pn, q_pn, qbits = fused_agc_quantization(
        y_pn, scale, shift, w_vref, w_vr, tile_l=tile_l)

    # ---- digitalDNN, run in [p, N] orientation (tiny matmuls; no q transpose).
    q = q_pn[:P_ADCS, :n]                                        # [7, N]
    h = jnp.maximum(
        jnp.dot(params["l1_w"], q, precision=HI) + params["l1_b"][:, None], 0.0)
    out = jax.nn.sigmoid(
        jnp.dot(params["l2_w"], h, precision=HI) + params["l2_b"][:, None])
    return out.T, qbits, vin_pn, w_noisy                         # out: [N, 1]


# ---- pure-JAX reference (mirrors the PyTorch forward) for verification ------
def _reference_quantization(x, w_noisy, num_of_bits, num_of_adcs):
    length = x.shape[0]
    delta = 1e-30
    Q = jnp.zeros((length, num_of_adcs, num_of_bits), jnp.float32)
    q = jnp.zeros((length, num_of_adcs), jnp.float32)
    m = w_noisy.shape[0] - 1
    for j in reversed(range(num_of_bits)):
        bit_sum = w_noisy[m] * Vref
        m -= 1
        for k in range(j + 1, num_of_bits):
            bit_sum = bit_sum + (Q[:, :, k] + 1) / 2 * w_noisy[m] * Vr
            m -= 1
        Q = Q.at[:, :, j].set(jnp.sign(x - bit_sum + delta))
    for b in reversed(range(num_of_bits)):
        q = q + (Q[:, :, b] + 1) / 2 * Vr * 2 ** b
    return q, Q


if __name__ == "__main__":
    key = jax.random.PRNGKey(0)
    k_param, k_x, k_noise = jax.random.split(key, 3)

    batch = 256                       # small MNIST-like batch; 2 grid steps
    x = jax.random.uniform(k_x, (batch, ANALOG_LENGTH), jnp.float32)
    params = init_fullnet_params(k_param)

    fwd = jax.jit(functools.partial(full_net_forward, tile_l=128))
    out, qbits_native, vin_native, w_noisy = fwd(x, params, k_noise)
    jax.block_until_ready((out, qbits_native, vin_native, w_noisy))

    # ---- verify against a pure-JAX transcription of the PyTorch forward -----
    vin = vin_native[:P_ADCS, :batch].T                           # [N, p]

    # Analog + AGC check (loose tol: different contraction orientation).
    cos_arg = ((math.pi / ANALOG_LENGTH)
               * (jnp.arange(P_ADCS, dtype=jnp.float32)[None, :] + 0.5)
               * jnp.arange(ANALOG_LENGTH, dtype=jnp.float32)[:, None]
               + params["phi"])
    y_ref = jnp.dot(x, params["a_mat"] * jnp.cos(cos_arg), precision=HI)
    mean_r = y_ref.mean(0)
    var_r = y_ref.var(0)
    vin_ref = ((y_ref - mean_r) * jax.lax.rsqrt(var_r + BN_EPS)
               * params["bn_gamma"] + params["bn_beta"] + 1.0) * (Vdd / 2.0)
    assert jnp.allclose(vin, vin_ref, atol=1e-4), "analog/AGC mismatch"

    # Quantizer check (driven from the kernel's own Vin, so exact).
    q_expect, big_q_expect = _reference_quantization(vin, w_noisy, Q_BITS, P_ADCS)
    qb = (qbits_native.reshape(Q_BITS, A_PAD, -1)[:, :P_ADCS, :batch]
          .astype(jnp.float32))
    big_q = jnp.transpose(qb, (2, 1, 0))                          # [N, p, B]
    assert big_q.shape == (batch, P_ADCS, Q_BITS)
    assert jnp.allclose(big_q, big_q_expect, atol=1e-6), "bit planes mismatch"

    # Digital head check.
    h_ref = jnp.maximum(
        jnp.dot(q_expect, params["l1_w"].T, precision=HI) + params["l1_b"], 0.0)
    out_ref = jax.nn.sigmoid(
        jnp.dot(h_ref, params["l2_w"].T, precision=HI) + params["l2_b"])
    assert out.shape == (batch, 1)
    assert jnp.allclose(out, out_ref, atol=1e-5), "q / digital head mismatch"
    assert bool(jnp.all(jnp.isfinite(out)))

    print("KERNEL_OK")
</pallas_src>

<mosaic_0001>
module attributes {stable_mosaic.version = 11 : i64} {
  func.func @_agc_quant_kernel(%arg0: i32, %arg1: memref<8x128xf32, #tpu.memory_space<vmem>>, %arg2: memref<8x1xf32, #tpu.memory_space<vmem>>, %arg3: memref<8x1xf32, #tpu.memory_space<vmem>>, %arg4: memref<10xf32, #tpu.memory_space<smem>>, %arg5: memref<10xf32, #tpu.memory_space<smem>>, %arg6: memref<8x128xf32, #tpu.memory_space<vmem>>, %arg7: memref<8x128xf32, #tpu.memory_space<vmem>>, %arg8: memref<32x128xi8, #tpu.memory_space<vmem>>) attributes {dimension_semantics = [#tpu.dimension_semantics<parallel>], iteration_bounds = array<i64: 2>, scalar_prefetch = 0 : i64, scratch_operands = 0 : i64, tpu.core_type = #tpu.core_type<tc>, window_params = [{transform_indices = @transform_0, window_bounds = array<i64: 8, 128>}, {pipeline_mode = #tpu.pipeline_mode<synchronous>, transform_indices = @transform_1, window_bounds = array<i64: 8, 1>}, {pipeline_mode = #tpu.pipeline_mode<synchronous>, transform_indices = @transform_2, window_bounds = array<i64: 8, 1>}, {transform_indices = @transform_3, window_bounds = array<i64: 10>}, {transform_indices = @transform_4, window_bounds = array<i64: 10>}, {transform_indices = @transform_5, window_bounds = array<i64: 8, 128>}, {transform_indices = @transform_6, window_bounds = array<i64: 8, 128>}, {transform_indices = @transform_7, window_bounds = array<i64: 32, 128>}]} {
    %c0 = arith.constant 0 : index
    %c0_0 = arith.constant 0 : index
    %0 = vector.load %arg1[%c0, %c0_0] : memref<8x128xf32, #tpu.memory_space<vmem>>, vector<8x128xf32>
    %c0_1 = arith.constant 0 : index
    %c0_2 = arith.constant 0 : index
    %1 = vector.load %arg2[%c0_1, %c0_2] : memref<8x1xf32, #tpu.memory_space<vmem>>, vector<8x1xf32>
    %2 = vector.broadcast %1 : vector<8x1xf32> to vector<8x128xf32>
    %3 = arith.mulf %0, %2 : vector<8x128xf32>
    %c0_3 = arith.constant 0 : index
    %c0_4 = arith.constant 0 : index
    %4 = vector.load %arg3[%c0_3, %c0_4] : memref<8x1xf32, #tpu.memory_space<vmem>>, vector<8x1xf32>
    %5 = vector.broadcast %4 : vector<8x1xf32> to vector<8x128xf32>
    %6 = arith.addf %3, %5 : vector<8x128xf32>
    %c0_5 = arith.constant 0 : index
    %c0_6 = arith.constant 0 : index
    %7 = vector.load %arg6[%c0_5, %c0_6] : memref<8x128xf32, #tpu.memory_space<vmem>>, vector<8x128xf32>
    tpu.vector_store %arg6[%c0_5, %c0_6], %6 {strides = array<i32>} : memref<8x128xf32, #tpu.memory_space<vmem>>, vector<8x128xf32>,
    %c9 = arith.constant 9 : index
    %8 = memref.load %arg4[%c9] : memref<10xf32, #tpu.memory_space<smem>>
    %9 = vector.broadcast %8 : f32 to vector<8x128xf32>
    %10 = arith.cmpf oge, %6, %9 : vector<8x128xf32>
    %11 = arith.extui %10 : vector<8x128xi1> to vector<8x128xi32>
    %12 = arith.sitofp %11 : vector<8x128xi32> to vector<8x128xf32>
    %c8 = arith.constant 8 : index
    %13 = memref.load %arg4[%c8] : memref<10xf32, #tpu.memory_space<smem>>
    %c7 = arith.constant 7 : index
    %14 = memref.load %arg5[%c7] : memref<10xf32, #tpu.memory_space<smem>>
    %15 = vector.broadcast %14 : f32 to vector<8x128xf32>
    %16 = arith.mulf %12, %15 : vector<8x128xf32>
    %17 = vector.broadcast %13 : f32 to vector<8x128xf32>
    %18 = arith.addf %17, %16 : vector<8x128xf32>
    %19 = arith.cmpf oge, %6, %18 : vector<8x128xf32>
    %20 = arith.extui %19 : vector<8x128xi1> to vector<8x128xi32>
    %21 = arith.sitofp %20 : vector<8x128xi32> to vector<8x128xf32>
    %c6 = arith.constant 6 : index
    %22 = memref.load %arg4[%c6] : memref<10xf32, #tpu.memory_space<smem>>
    %c5 = arith.constant 5 : index
    %23 = memref.load %arg5[%c5] : memref<10xf32, #tpu.memory_space<smem>>
    %24 = vector.broadcast %23 : f32 to vector<8x128xf32>
    %25 = arith.mulf %21, %24 : vector<8x128xf32>
    %26 = vector.broadcast %22 : f32 to vector<8x128xf32>
    %27 = arith.addf %26, %25 : vector<8x128xf32>
    %c4 = arith.constant 4 : index
    %28 = memref.load %arg5[%c4] : memref<10xf32, #tpu.memory_space<smem>>
    %29 = vector.broadcast %28 : f32 to vector<8x128xf32>
    %30 = arith.mulf %12, %29 : vector<8x128xf32>
    %31 = arith.addf %27, %30 : vector<8x128xf32>
    %32 = arith.cmpf oge, %6, %31 : vector<8x128xf32>
    %33 = arith.extui %32 : vector<8x128xi1> to vector<8x128xi32>
    %34 = arith.sitofp %33 : vector<8x128xi32> to vector<8x128xf32>
    %c3 = arith.constant 3 : index
    %35 = memref.load %arg4[%c3] : memref<10xf32, #tpu.memory_space<smem>>
    %c2 = arith.constant 2 : index
    %36 = memref.load %arg5[%c2] : memref<10xf32, #tpu.memory_space<smem>>
    %37 = vector.broadcast %36 : f32 to vector<8x128xf32>
    %38 = arith.mulf %34, %37 : vector<8x128xf32>
    %39 = vector.broadcast %35 : f32 to vector<8x128xf32>
    %40 = arith.addf %39, %38 : vector<8x128xf32>
    %c1 = arith.constant 1 : index
    %41 = memref.load %arg5[%c1] : memref<10xf32, #tpu.memory_space<smem>>
    %42 = vector.broadcast %41 : f32 to vector<8x128xf32>
    %43 = arith.mulf %21, %42 : vector<8x128xf32>
    %44 = arith.addf %40, %43 : vector<8x128xf32>
    %c0_7 = arith.constant 0 : index
    %45 = memref.load %arg5[%c0_7] : memref<10xf32, #tpu.memory_space<smem>>
    %46 = vector.broadcast %45 : f32 to vector<8x128xf32>
    %47 = arith.mulf %12, %46 : vector<8x128xf32>
    %48 = arith.addf %44, %47 : vector<8x128xf32>
    %49 = arith.cmpf oge, %6, %48 : vector<8x128xf32>
    %50 = arith.extui %49 : vector<8x128xi1> to vector<8x128xi32>
    %51 = arith.sitofp %50 : vector<8x128xi32> to vector<8x128xf32>
    %cst = arith.constant 5.000000e-01 : f32
    %52 = vector.broadcast %cst : f32 to vector<8x128xf32>
    %53 = arith.mulf %12, %52 : vector<8x128xf32>
    %cst_8 = arith.constant 2.500000e-01 : f32
    %54 = vector.broadcast %cst_8 : f32 to vector<8x128xf32>
    %55 = arith.mulf %21, %54 : vector<8x128xf32>
    %56 = arith.addf %53, %55 : vector<8x128xf32>
    %cst_9 = arith.constant 1.250000e-01 : f32
    %57 = vector.broadcast %cst_9 : f32 to vector<8x128xf32>
    %58 = arith.mulf %34, %57 : vector<8x128xf32>
    %59 = arith.addf %56, %58 : vector<8x128xf32>
    %cst_10 = arith.constant 6.250000e-02 : f32
    %60 = vector.broadcast %cst_10 : f32 to vector<8x128xf32>
    %61 = arith.mulf %51, %60 : vector<8x128xf32>
    %62 = arith.addf %59, %61 : vector<8x128xf32>
    %c0_11 = arith.constant 0 : index
    %c0_12 = arith.constant 0 : index
    %63 = vector.load %arg7[%c0_11, %c0_12] : memref<8x128xf32, #tpu.memory_space<vmem>>, vector<8x128xf32>
    tpu.vector_store %arg7[%c0_11, %c0_12], %62 {strides = array<i32>} : memref<8x128xf32, #tpu.memory_space<vmem>>, vector<8x128xf32>,
    %64 = tpu.concatenate %51, %34, %21, %12 in 0 : vector<8x128xf32>, vector<8x128xf32>, vector<8x128xf32>, vector<8x128xf32> -> vector<32x128xf32>
    %cst_13 = arith.constant 2.000000e+00 : f32
    %65 = vector.broadcast %cst_13 : f32 to vector<32x128xf32>
    %66 = arith.mulf %64, %65 : vector<32x128xf32>
    %cst_14 = arith.constant 1.000000e+00 : f32
    %67 = vector.broadcast %cst_14 : f32 to vector<32x128xf32>
    %68 = arith.subf %66, %67 : vector<32x128xf32>
    %69 = arith.fptosi %68 : vector<32x128xf32> to vector<32x128xi8>
    %c0_15 = arith.constant 0 : index
    %c0_16 = arith.constant 0 : index
    %70 = vector.load %arg8[%c0_15, %c0_16] : memref<32x128xi8, #tpu.memory_space<vmem>>, vector<32x128xi8>
    tpu.vector_store %arg8[%c0_15, %c0_16], %69 {strides = array<i32>} : memref<32x128xi8, #tpu.memory_space<vmem>>, vector<32x128xi8>,
    return
  }
  func.func @transform_0(%arg0: i32) -> (i32, i32) {
    %c0_i32 = arith.constant 0 : i32
    %c0_i32_0 = arith.constant 0 : i32
    return %c0_i32, %arg0 : i32, i32
  }
  func.func @transform_1(%arg0: i32) -> (i32, i32) {
    %c0_i32 = arith.constant 0 : i32
    %c0_i32_0 = arith.constant 0 : i32
    %c0_i32_1 = arith.constant 0 : i32
    return %c0_i32, %c0_i32_0 : i32, i32
  }
  func.func @transform_2(%arg0: i32) -> (i32, i32) {
    %c0_i32 = arith.constant 0 : i32
    %c0_i32_0 = arith.constant 0 : i32
    %c0_i32_1 = arith.constant 0 : i32
    return %c0_i32, %c0_i32_0 : i32, i32
  }
  func.func @transform_3(%arg0: i32) -> i32 {
    %c0_i32 = arith.constant 0 : i32
    %c0_i32_0 = arith.constant 0 : i32
    return %c0_i32 : i32
  }
  func.func @transform_4(%arg0: i32) -> i32 {
    %c0_i32 = arith.constant 0 : i32
    %c0_i32_0 = arith.constant 0 : i32
    return %c0_i32 : i32
  }
  func.func @transform_5(%arg0: i32) -> (i32, i32) {
    %c0_i32 = arith.constant 0 : i32
    %c0_i32_0 = arith.constant 0 : i32
    return %c0_i32, %arg0 : i32, i32
  }
  func.func @transform_6(%arg0: i32) -> (i32, i32) {
    %c0_i32 = arith.constant 0 : i32
    %c0_i32_0 = arith.constant 0 : i32
    return %c0_i32, %arg0 : i32, i32
  }
  func.func @transform_7(%arg0: i32) -> (i32, i32) {
    %c0_i32 = arith.constant 0 : i32
    %c0_i32_0 = arith.constant 0 : i32
    return %c0_i32, %arg0 : i32, i32
  }
}

</mosaic_0001>

<llo_original>
// kernel: full_net_forward.1
$region0: #{full_net_forward.1}
  #allocation0 [shape = 'u32[]', space=smem, size = 0x4, offset = 0x4, fixed_abs, tag = 'smem constant byte address 0x4 - core index']
  #allocation1 [shape = 'u32[72,128]{1,0:T(1,128)}', space=vmem, size = 0x9000, scoped, tag = 'internal scratch']
  %s0 = inlined_call_operand.vmem [shape: f32[8,256], index: 0, kind: input, shape index: {}]
  %s1 = inlined_call_operand.vmem [shape: f32[8,1], index: 1, kind: input, shape index: {}]
  %s2 = inlined_call_operand.vmem [shape: f32[8,1], index: 2, kind: input, shape index: {}]
  %s3 = inlined_call_operand.vmem [shape: f32[10], index: 3, kind: input, shape index: {}, may-alias: {3,4}]
  %s4 = inlined_call_operand.vmem [shape: f32[10], index: 4, kind: input, shape index: {}, may-alias: {3,4}]
  %s5 = inlined_call_operand.hbm [shape: f32[8,256], index: 5, kind: output, shape index: {0}]
  %s6 = inlined_call_operand.vmem [shape: f32[8,256], index: 6, kind: output, shape index: {1}]
  %s7 = inlined_call_operand.hbm [shape: s8[32,256], index: 7, kind: output, shape index: {2}]
  %8 = xla_tuple %s5, %s6, %s7
  %s9 = sld [smem:[#allocation0]]
  $region77: #{full_net_forward.1} parent=0
    _
  %s11 = ssub.s32 1, %s9
  %s12 = scalar_select 0, %s11, %s9
  $region1: #{full_net_forward.1} parent=0
    #allocation2 [shape = 'u8[512]{0}', space=smem, size = 0x200, scoped, tag = 'input window, operand 3, single buffered']
    #allocation3 [shape = 's32[2]{0}', space=sflag, size = 0x8, scoped, tag = 'scoped memory for full_net_forward.1']
    #allocation4 [shape = 's32[2]{0}', space=sflag, size = 0x8, scoped, tag = 'scoped memory for full_net_forward.1']
    #allocation5 [shape = 'u8[512]{0}', space=smem, size = 0x200, scoped, tag = 'input window, operand 4, single buffered']
    #allocation6 [shape = 's32[1]{0}', space=sflag, size = 0x4, scoped, tag = 'scoped memory for full_net_forward.1']
    #allocation7 [shape = 'u8[8192]{0}', space=vmem, size = 0x2000, scoped, tag = 'output window, operand 0']
    #allocation8 [shape = 'u8[8192]{0}', space=vmem, size = 0x2000, scoped, tag = 'output window, operand 2']
    #allocation9 [shape = 's32[2]{0}', space=sflag, size = 0x8, scoped, tag = 'scoped memory for full_net_forward.1']
    %13 = vsyncpa [#allocation4], 0
    %14 = vsyncpa [#allocation6], 0
    %15 = vsyncpa [#allocation3], 0
    %s16 = scalar_lea.sflag [#allocation3], 1
    %17 = vsyncpa %s16, 0
    %18 = vsyncpa [#allocation9], 0
    %s19 = scalar_lea.sflag [#allocation9], 1
    %20 = vsyncpa %s19, 0
    loop: start=0, step=1, limit=4
    $region2: #{full_net_forward.1} parent=1 // loop_pre_header
      _
    $region3: #{full_net_forward.1} parent=1 // loop_header
      %s22 = sphi 0, %s26
      %p23 = scmp.ge.s32.totalorder %s22, 4
      %s32 = sphi 0, %s34
      %s35 = sphi 0, %s32
      %s36 = sphi 0, %s35
      %s52 = sphi 0, %s36
      %s56 = sphi 0, %s56
      %s58 = sphi 0, %s56
      %s59 = sphi 0, %s58
      %s73 = sphi 0, %s59
      %s77 = sphi 0, %s77
      %s79 = sphi 0, %s77
      %s80 = sphi 0, %s79
      %s94 = sphi 0, %s80
      %s98 = sphi 0, %s98
      %s100 = sphi 0, %s98
      %s101 = sphi 0, %s100
      %s115 = sphi 0, %s101
      %s119 = sphi 0, %s119
      %s121 = sphi 0, %s119
      %s122 = sphi 0, %s121
      %s136 = sphi 0, %s122
      %s142 = sphi 0, %s144
      %s145 = sphi 0, %s142
      %s146 = sphi 0, %s145
      %s162 = sphi 0, %s146
      %s168 = sphi 0, %s170
      %s171 = sphi 0, %s168
      %s172 = sphi 0, %s171
      %s188 = sphi 0, %s172
      %s194 = sphi 0, %s196
      %s197 = sphi 0, %s194
      %s198 = sphi 0, %s197
      %s214 = sphi 0, %s198
    $region4: #{full_net_forward.1} parent=1 // loop_header_branch
      %25 = sbr.rel (%p23) target = $region8
    $region5: #{full_net_forward.1} parent=1 // loop_body
      %s27 = ssub.s32 %s22, 1
      %s28 = ssub.s32 %s22, 2
      %s29 = sadd.s32 %s22, 1
      %s30 = ssub.s32 %s22, %s29
      %p31 = scmp.eq.s32.totalorder %s30, 0
      %s33 = sadd.s32 %s32, 1
      %s34 = scalar_select %p31, %s32, %s33
      %p37 = pneg %p31
      %p38 = scmp.eq.s32.totalorder %s22, 1
      %p39 = por %p37, %p38
      %p40 = scmp.ne.s32.totalorder %s32, %s35
      %p41 = scmp.eq.s32.totalorder %s22, 0
      %p42 = por %p40, %p41
      %p43 = scmp.ne.s32.totalorder %s32, %s35
      %p44 = scmp.eq.s32.totalorder %s27, 1
      %p45 = por %p43, %p44
      %p46 = scmp.ne.s32.totalorder %s35, %s36
      %p47 = scmp.eq.s32.totalorder %s27, 0
      %p48 = por %p46, %p47
      %p49 = scmp.ne.s32.totalorder %s35, %s36
      %p50 = scmp.eq.s32.totalorder %s28, 1
      %p51 = por %p49, %p50
      %p53 = scmp.ne.s32.totalorder %s36, %s52
      %p54 = scmp.eq.s32.totalorder %s28, 0
      %p55 = por %p53, %p54
      %s57 = sadd.s32 %s56, 1
      %p60 = scmp.eq.s32.totalorder %s22, 1
      %p61 = scmp.ne.s32.totalorder %s56, %s58
      %p62 = scmp.eq.s32.totalorder %s22, 0
      %p63 = por %p61, %p62
      %p64 = scmp.ne.s32.totalorder %s56, %s58
      %p65 = scmp.eq.s32.totalorder %s27, 1
      %p66 = por %p64, %p65
      %p67 = scmp.ne.s32.totalorder %s58, %s59
      %p68 = scmp.eq.s32.totalorder %s27, 0
      %p69 = por %p67, %p68
      %p70 = scmp.ne.s32.totalorder %s58, %s59
      %p71 = scmp.eq.s32.totalorder %s28, 1
      %p72 = por %p70, %p71
      %p74 = scmp.ne.s32.totalorder %s59, %s73
      %p75 = scmp.eq.s32.totalorder %s28, 0
      %p76 = por %p74, %p75
      %s78 = sadd.s32 %s77, 1
      %p81 = scmp.eq.s32.totalorder %s22, 1
      %p82 = scmp.ne.s32.totalorder %s77, %s79
      %p83 = scmp.eq.s32.totalorder %s22, 0
      %p84 = por %p82, %p83
      %p85 = scmp.ne.s32.totalorder %s77, %s79
      %p86 = scmp.eq.s32.totalorder %s27, 1
      %p87 = por %p85, %p86
      %p88 = scmp.ne.s32.totalorder %s79, %s80
      %p89 = scmp.eq.s32.totalorder %s27, 0
      %p90 = por %p88, %p89
      %p91 = scmp.ne.s32.totalorder %s79, %s80
      %p92 = scmp.eq.s32.totalorder %s28, 1
      %p93 = por %p91, %p92
      %p95 = scmp.ne.s32.totalorder %s80, %s94
      %p96 = scmp.eq.s32.totalorder %s28, 0
      %p97 = por %p95, %p96
      %s99 = sadd.s32 %s98, 1
      %p102 = scmp.eq.s32.totalorder %s22, 1
      %p103 = scmp.ne.s32.totalorder %s98, %s100
      %p104 = scmp.eq.s32.totalorder %s22, 0
      %p105 = por %p103, %p104
      %p106 = scmp.ne.s32.totalorder %s98, %s100
      %p107 = scmp.eq.s32.totalorder %s27, 1
      %p108 = por %p106, %p107
      %p109 = scmp.ne.s32.totalorder %s100, %s101
      %p110 = scmp.eq.s32.totalorder %s27, 0
      %p111 = por %p109, %p110
      %p112 = scmp.ne.s32.totalorder %s100, %s101
      %p113 = scmp.eq.s32.totalorder %s28, 1
      %p114 = por %p112, %p113
      %p116 = scmp.ne.s32.totalorder %s101, %s115
      %p117 = scmp.eq.s32.totalorder %s28, 0
      %p118 = por %p116, %p117
      %s120 = sadd.s32 %s119, 1
      %p123 = scmp.eq.s32.totalorder %s22, 1
      %p124 = scmp.ne.s32.totalorder %s119, %s121
      %p125 = scmp.eq.s32.totalorder %s22, 0
      %p126 = por %p124, %p125
      %p127 = scmp.ne.s32.totalorder %s119, %s121
      %p128 = scmp.eq.s32.totalorder %s27, 1
      %p129 = por %p127, %p128
      %p130 = scmp.ne.s32.totalorder %s121, %s122
      %p131 = scmp.eq.s32.totalorder %s27, 0
      %p132 = por %p130, %p131
      %p133 = scmp.ne.s32.totalorder %s121, %s122
      %p134 = scmp.eq.s32.totalorder %s28, 1
      %p135 = por %p133, %p134
      %p137 = scmp.ne.s32.totalorder %s122, %s136
      %p138 = scmp.eq.s32.totalorder %s28, 0
      %p139 = por %p137, %p138
      %s140 = ssub.s32 %s22, %s29
      %p141 = scmp.eq.s32.totalorder %s140, 0
      %s143 = sadd.s32 %s142, 1
      %s144 = scalar_select %p141, %s142, %s143
      %p147 = pneg %p141
      %p148 = scmp.eq.s32.totalorder %s22, 1
      %p149 = por %p147, %p148
      %p150 = scmp.ne.s32.totalorder %s142, %s145
      %p151 = scmp.eq.s32.totalorder %s22, 0
      %p152 = por %p150, %p151
      %p153 = scmp.ne.s32.totalorder %s142, %s145
      %p154 = scmp.eq.s32.totalorder %s27, 1
      %p155 = por %p153, %p154
      %p156 = scmp.ne.s32.totalorder %s145, %s146
      %p157 = scmp.eq.s32.totalorder %s27, 0
      %p158 = por %p156, %p157
      %p159 = scmp.ne.s32.totalorder %s145, %s146
      %p160 = scmp.eq.s32.totalorder %s28, 1
      %p161 = por %p159, %p160
      %p163 = scmp.ne.s32.totalorder %s146, %s162
      %p164 = scmp.eq.s32.totalorder %s28, 0
      %p165 = por %p163, %p164
      %s166 = ssub.s32 %s22, %s29
      %p167 = scmp.eq.s32.totalorder %s166, 0
      %s169 = sadd.s32 %s168, 1
      %s170 = scalar_select %p167, %s168, %s169
      %p173 = pneg %p167
      %p174 = scmp.eq.s32.totalorder %s22, 1
      %p175 = por %p173, %p174
      %p176 = scmp.ne.s32.totalorder %s168, %s171
      %p177 = scmp.eq.s32.totalorder %s22, 0
      %p178 = por %p176, %p177
      %p179 = scmp.ne.s32.totalorder %s168, %s171
      %p180 = scmp.eq.s32.totalorder %s27, 1
      %p181 = por %p179, %p180
      %p182 = scmp.ne.s32.totalorder %s171, %s172
      %p183 = scmp.eq.s32.totalorder %s27, 0
      %p184 = por %p182, %p183
      %p185 = scmp.ne.s32.totalorder %s171, %s172
      %p186 = scmp.eq.s32.totalorder %s28, 1
      %p187 = por %p185, %p186
      %p189 = scmp.ne.s32.totalorder %s172, %s188
      %p190 = scmp.eq.s32.totalorder %s28, 0
      %p191 = por %p189, %p190
      %s192 = ssub.s32 %s22, %s29
      %p193 = scmp.eq.s32.totalorder %s192, 0
      %s195 = sadd.s32 %s194, 1
      %s196 = scalar_select %p193, %s194, %s195
      %p199 = pneg %p193
      %p200 = scmp.eq.s32.totalorder %s22, 1
      %p201 = por %p199, %p200
      %p202 = scmp.ne.s32.totalorder %s194, %s197
      %p203 = scmp.eq.s32.totalorder %s22, 0
      %p204 = por %p202, %p203
      %p205 = scmp.ne.s32.totalorder %s194, %s197
      %p206 = scmp.eq.s32.totalorder %s27, 1
      %p207 = por %p205, %p206
      %p208 = scmp.ne.s32.totalorder %s197, %s198
      %p209 = scmp.eq.s32.totalorder %s27, 0
      %p210 = por %p208, %p209
      %p211 = scmp.ne.s32.totalorder %s197, %s198
      %p212 = scmp.eq.s32.totalorder %s28, 1
      %p213 = por %p211, %p212
      %p215 = scmp.ne.s32.totalorder %s198, %s214
      %p216 = scmp.eq.s32.totalorder %s28, 0
      %p217 = por %p215, %p216
      %p218 = scmp.le.s32.totalorder 1, %s22
      %p219 = scmp.lt.s32.totalorder %s22, 3
      %p220 = pnand %p218, %p219
      %p221 = pneg %p220
      // Predicated region
      $region9: #{full_net_forward.1} parent=5 // pred_check
        _
      $region10: #{full_net_forward.1} parent=5 // pred_check_branch
        %223 = sbr.rel (%p220) target = $region12
      $region11: #{full_net_forward.1} parent=5 // pred_region
        %s224 = ssub.s32 %s22, 1
        // Predicated region
        $region13: #{full_net_forward.1} parent=11 // pred_check
          %p225 = pneg %p69
        $region14: #{full_net_forward.1} parent=11 // pred_check_branch
          %227 = sbr.rel (%p225) target = $region16
        $region15: #{full_net_forward.1} parent=11 // pred_region
          _
        $region16: #{full_net_forward.1} parent=11 // pred_fallthru
          _
        // Predicated region
        $region17: #{full_net_forward.1} parent=11 // pred_check
          %p228 = pneg %p90
        $region18: #{full_net_forward.1} parent=11 // pred_check_branch
          %230 = sbr.rel (%p228) target = $region20
        $region19: #{full_net_forward.1} parent=11 // pred_region
          _
        $region20: #{full_net_forward.1} parent=11 // pred_fallthru
          _
        // Predicated region
        $region21: #{full_net_forward.1} parent=11 // pred_check
          %p231 = pneg %p111
        $region22: #{full_net_forward.1} parent=11 // pred_check_branch
          %233 = sbr.rel (%p231) target = $region24
        $region23: #{full_net_forward.1} parent=11 // pred_region
          %235 = vsyncadd [#allocation4], 0
          %s237 = sshll.u32 %s3, 4
          %s238 = int_to_ptr.vmem [resolvable:$true] %s237
          %240 = dma.vmem_to_smem %s238, 16, [#allocation2], [#allocation4]
        $region24: #{full_net_forward.1} parent=11 // pred_fallthru
          _
        // Predicated region
        $region25: #{full_net_forward.1} parent=11 // pred_check
          %p241 = pneg %p132
        $region26: #{full_net_forward.1} parent=11 // pred_check_branch
          %243 = sbr.rel (%p241) target = $region28
        $region27: #{full_net_forward.1} parent=11 // pred_region
          %245 = vsyncadd [#allocation6], 0
          %s247 = sshll.u32 %s4, 4
          %s248 = int_to_ptr.vmem [resolvable:$true] %s247
          %250 = dma.vmem_to_smem %s248, 16, [#allocation5], [#allocation6]
        $region28: #{full_net_forward.1} parent=11 // pred_fallthru
          _
      $region12: #{full_net_forward.1} parent=5 // pred_fallthru
        _
      %p251 = scmp.lt.s32.totalorder %s22, 2
      // Predicated region
      $region29: #{full_net_forward.1} parent=5 // pred_check
        %p252 = pneg %p251
      $region30: #{full_net_forward.1} parent=5 // pred_check_branch
        %254 = sbr.rel (%p252) target = $region32
      $region31: #{full_net_forward.1} parent=5 // pred_region
        // Predicated region
        $region33: #{full_net_forward.1} parent=31 // pred_check
          %p255 = pneg %p42
        $region34: #{full_net_forward.1} parent=31 // pred_check_branch
          %257 = sbr.rel (%p255) target = $region36
        $region35: #{full_net_forward.1} parent=31 // pred_region
          %p258 = scmp.lt.s32.totalorder %s22, 1
          %s259 = scalar_select %p258, %s22, 1
          %s260 = smul.addr %s259, 8
          %s261 = scalar_lea.vmem %s0, %s260
        $region36: #{full_net_forward.1} parent=31 // pred_fallthru
          _
      $region32: #{full_net_forward.1} parent=5 // pred_fallthru
        _
      %p262 = scmp.le.s32.totalorder 1, %s22
      %p263 = scmp.lt.s32.totalorder %s22, 3
      %p264 = pnand %p262, %p263
      %p265 = pneg %p264
      // Predicated region
      $region37: #{full_net_forward.1} parent=5 // pred_check
        _
      $region38: #{full_net_forward.1} parent=5 // pred_check_branch
        %267 = sbr.rel (%p264) target = $region40
      $region39: #{full_net_forward.1} parent=5 // pred_region
        %s268 = ssub.s32 %s22, 1
        // Predicated region
        $region41: #{full_net_forward.1} parent=39 // pred_check
          %p269 = pneg %p111
        $region42: #{full_net_forward.1} parent=39 // pred_check_branch
          %271 = sbr.rel (%p269) target = $region44
        $region43: #{full_net_forward.1} parent=39 // pred_region
          %273 = dma.done [#allocation4], 16
        $region44: #{full_net_forward.1} parent=39 // pred_fallthru
          _
        // Predicated region
        $region45: #{full_net_forward.1} parent=39 // pred_check
          %p274 = pneg %p132
        $region46: #{full_net_forward.1} parent=39 // pred_check_branch
          %276 = sbr.rel (%p274) target = $region48
        $region47: #{full_net_forward.1} parent=39 // pred_region
          %278 = dma.done [#allocation6], 16
        $region48: #{full_net_forward.1} parent=39 // pred_fallthru
          _
        %279 = sfence
        %p280 = scmp.lt.s32.totalorder %s27, 1
        %s281 = scalar_select %p280, %s27, 1
        %s282 = smul.addr %s281, 8
        %s283 = scalar_lea.vmem %s0, %s282
        %p284 = pneg %p48
        %p285 = pneg %p45
        %p286 = pneg %p69
        %p287 = pneg %p66
        %p288 = pneg %p90
        %p289 = pneg %p87
        %p290 = pneg %p111
        %p291 = pneg %p108
        %p292 = pneg %p132
        %p293 = pneg %p129
        %p294 = pneg %p158
        %p295 = pneg %p155
        %s296 = sand.u32 %s145, 1
        %s297 = scalar_lea.sflag [#allocation3], %s296
        %s298 = sand.u32 %s145, 1
        %s299 = smul.addr %s298, 8
        %s300 = scalar_lea.vmem [#allocation7], %s299
        %p301 = pneg %p184
        %p302 = pneg %p181
        %p303 = scmp.lt.s32.totalorder %s27, 1
        %s304 = scalar_select %p303, %s27, 1
        %s305 = smul.addr %s304, 8
        %s306 = scalar_lea.vmem %s6, %s305
        %p307 = pneg %p210
        %p308 = pneg %p207
        %s309 = sand.u32 %s197, 1
        %s310 = scalar_lea.sflag [#allocation9], %s309
        %s311 = sand.u32 %s197, 1
        %s312 = smul.addr %s311, 8
        %s313 = scalar_lea.vmem [#allocation8], %s312
        %p314 = scmp.lt.s32.totalorder %s27, 1
        %s315 = scalar_select %p314, %s27, 1
        %s316 = smul.addr %s315, 8
        %s317 = scalar_lea.vmem %s0, %s316
        %p318 = scmp.lt.s32.totalorder %s27, 1
        %s319 = scalar_select %p318, %s27, 1
        %s320 = smul.addr %s319, 8
        %s321 = scalar_lea.vmem %s6, %s320
        %v322 = vld [vmem:[%s317] sm:$0xff]
        %v323 = vld [vmem:[%s1] sm:$0xff]
        %325 = vset.pattern.permute.xlu0 0
        %326 = vperm.xlu0 %325, %v323
        %v327 = vpop.permute.xlu0 %326
        %v329 = vmul.f32 %v322, %v327
        %v330 = vld [vmem:[%s2] sm:$0xff]
        %332 = vset.pattern.permute.xlu0 0
        %333 = vperm.xlu0 %332, %v330
        %v334 = vpop.permute.xlu0 %333
        %v336 = vadd.f32 %v329, %v334
        %337 = vst [vmem:[%s300] sm:$0xff] %v336
        %s338 = sld [smem:[#allocation2 + $0x9]]
        %v339 = vstv %s338
        %vm340 = vcmp.ge.f32.partialorder %v336, %v339
        %v341 = vsel %vm340, 1, 0
        %v342 = vcvt.s32.f32 %v341
        %s343 = sld [smem:[#allocation2 + $0x8]]
        %s344 = sld [smem:[#allocation5 + $0x7]]
        %v345 = vstv %s344
        %v346 = vmul.f32 %v342, %v345
        %v347 = vstv %s343
        %v348 = vadd.f32 %v347, %v346
        %vm349 = vcmp.ge.f32.partialorder %v336, %v348
        %v350 = vsel %vm349, 1, 0
        %v351 = vcvt.s32.f32 %v350
        %s352 = sld [smem:[#allocation2 + $0x6]]
        %s353 = sld [smem:[#allocation5 + $0x5]]
        %v354 = vstv %s353
        %v355 = vmul.f32 %v351, %v354
        %v356 = vstv %s352
        %v357 = vadd.f32 %v356, %v355
        %s358 = sld [smem:[#allocation5 + $0x4]]
        %v359 = vstv %s358
        %v360 = vmul.f32 %v342, %v359
        %v361 = vadd.f32 %v357, %v360
        %vm362 = vcmp.ge.f32.partialorder %v336, %v361
        %v363 = vsel %vm362, 1, 0
        %v364 = vcvt.s32.f32 %v363
        %s365 = sld [smem:[#allocation2 + $0x3]]
        %s366 = sld [smem:[#allocation5 + $0x2]]
        %v367 = vstv %s366
        %v368 = vmul.f32 %v364, %v367
        %v369 = vstv %s365
        %v370 = vadd.f32 %v369, %v368
        %s371 = sld [smem:[#allocation5 + $0x1]]
        %v372 = vstv %s371
        %v373 = vmul.f32 %v351, %v372
        %v374 = vadd.f32 %v370, %v373
        %s375 = sld [smem:[#allocation5]]
        %v376 = vstv %s375
        %v377 = vmul.f32 %v342, %v376
        %v378 = vadd.f32 %v374, %v377
        %vm379 = vcmp.ge.f32.partialorder %v336, %v378
        %v380 = vsel %vm379, 1, 0
        %v381 = vcvt.s32.f32 %v380
        %v382 = vmul.f32 %v342, 0.5
        %v383 = vmul.f32 %v351, 0.25
        %v384 = vadd.f32 %v382, %v383
        %v385 = vmul.f32 %v364, 0.125
        %v386 = vadd.f32 %v384, %v385
        %v387 = vmul.f32 %v381, 0.0625
        %v388 = vadd.f32 %v386, %v387
        %389 = vst [vmem:[%s321] sm:$0xff] %v388
        %v390 = vmul.f32 %v381, 2.0
        %v391 = vmul.f32 %v364, 2.0
        %v392 = vmul.f32 %v351, 2.0
        %v393 = vmul.f32 %v342, 2.0
        %v394 = vsub.f32 %v390, 1.0
        %v395 = vsub.f32 %v391, 1.0
        %v396 = vsub.f32 %v392, 1.0
        %v397 = vsub.f32 %v393, 1.0
        %v398 = vmax.f32 %v394, -128.0
        %v399 = vmax.f32 %v395, -128.0
        %v400 = vmax.f32 %v396, -128.0
        %v401 = vmax.f32 %v397, -128.0
        %v402 = vmin.f32 %v398, 127.0
        %v403 = vmin.f32 %v399, 127.0
        %v404 = vmin.f32 %v400, 127.0
        %v405 = vmin.f32 %v401, 127.0
        %v406 = vcvt.f32.s32.to.zero.pseudo %v402
        %v407 = vcvt.f32.s32.to.zero.pseudo %v403
        %v408 = vcvt.f32.s32.to.zero.pseudo %v404
        %v409 = vcvt.f32.s32.to.zero.pseudo %v405
        %v410 = vpack.c.b16 %v407, %v406
        %v411 = vpack.c.b16 %v409, %v408
        %v412 = vpack.c.b8 %v411, %v410
        %413 = vst [vmem:[%s313] sm:$0xff] %v412
        %s414 = sand.u32 %s145, 1
        %s415 = scalar_lea.sflag [#allocation3], %s414
        %s416 = sand.u32 %s145, 1
        %s417 = smul.addr %s416, 8
        %s418 = scalar_lea.vmem [#allocation7], %s417
        %p419 = scmp.lt.s32.totalorder %s27, 1
        %s420 = scalar_select %p419, %s27, 1
        %s421 = smul.addr %s420, 8
        %s422 = scalar_lea.vmem %s6, %s421
        %s423 = sand.u32 %s197, 1
        %s424 = scalar_lea.sflag [#allocation9], %s423
        %s425 = sand.u32 %s197, 1
        %s426 = smul.addr %s425, 8
        %s427 = scalar_lea.vmem [#allocation8], %s426
        // Predicated region
        $region49: #{full_net_forward.1} parent=39 // pred_check
          %p428 = pneg %p155
        $region50: #{full_net_forward.1} parent=39 // pred_check_branch
          %430 = sbr.rel (%p428) target = $region52
        $region51: #{full_net_forward.1} parent=39 // pred_region
          %432 = vsyncadd %s415, 0
          %s433 = smul.addr %s27, 8
          %s434 = scalar_lea.hbm %s5, %s433
          %s436 = sshll.u32 %s418, 4
          %s437 = int_to_ptr.vmem [resolvable:$true] %s436
          %s438 = sshll.u32 %s434, 4
          %s439 = int_to_ptr.hbm [resolvable:$true] %s438
          %441 = dma.vmem_to_hbm [thread:$0]  %s437, 128, %s439, %s415
        $region52: #{full_net_forward.1} parent=39 // pred_fallthru
          _
        // Predicated region
        $region53: #{full_net_forward.1} parent=39 // pred_check
          %p442 = pneg %p181
        $region54: #{full_net_forward.1} parent=39 // pred_check_branch
          %444 = sbr.rel (%p442) target = $region56
        $region55: #{full_net_forward.1} parent=39 // pred_region
          _
        $region56: #{full_net_forward.1} parent=39 // pred_fallthru
          _
        // Predicated region
        $region57: #{full_net_forward.1} parent=39 // pred_check
          %p445 = pneg %p207
        $region58: #{full_net_forward.1} parent=39 // pred_check_branch
          %447 = sbr.rel (%p445) target = $region60
        $region59: #{full_net_forward.1} parent=39 // pred_region
          %449 = vsyncadd %s424, 0
          %s450 = smul.addr %s27, 8
          %s451 = scalar_lea.hbm %s7, %s450
          %s453 = sshll.u32 %s427, 4
          %s454 = int_to_ptr.vmem [resolvable:$true] %s453
          %s455 = sshll.u32 %s451, 4
          %s456 = int_to_ptr.hbm [resolvable:$true] %s455
          %458 = dma.vmem_to_hbm [thread:$0]  %s454, 128, %s456, %s424
        $region60: #{full_net_forward.1} parent=39 // pred_fallthru
          _
      $region40: #{full_net_forward.1} parent=5 // pred_fallthru
        _
      %p459 = scmp.le.s32.totalorder 2, %s22
      // Predicated region
      $region61: #{full_net_forward.1} parent=5 // pred_check
        %p460 = pneg %p459
      $region62: #{full_net_forward.1} parent=5 // pred_check_branch
        %462 = sbr.rel (%p460) target = $region64
      $region63: #{full_net_forward.1} parent=5 // pred_region
        %s463 = ssub.s32 %s22, 2
        // Predicated region
        $region65: #{full_net_forward.1} parent=63 // pred_check
          %p464 = pneg %p161
        $region66: #{full_net_forward.1} parent=63 // pred_check_branch
          %466 = sbr.rel (%p464) target = $region68
        $region67: #{full_net_forward.1} parent=63 // pred_region
          %s467 = sand.u32 %s146, 1
          %s468 = scalar_lea.sflag [#allocation3], %s467
          %s469 = sand.u32 %s146, 1
          %s470 = smul.addr %s469, 8
          %s471 = scalar_lea.vmem [#allocation7], %s470
          %473 = dma.done %s468, 128
        $region68: #{full_net_forward.1} parent=63 // pred_fallthru
          _
        // Predicated region
        $region69: #{full_net_forward.1} parent=63 // pred_check
          %p474 = pneg %p187
        $region70: #{full_net_forward.1} parent=63 // pred_check_branch
          %476 = sbr.rel (%p474) target = $region72
        $region71: #{full_net_forward.1} parent=63 // pred_region
          %p477 = scmp.lt.s32.totalorder %s28, 1
          %s478 = scalar_select %p477, %s28, 1
          %s479 = smul.addr %s478, 8
          %s480 = scalar_lea.vmem %s6, %s479
        $region72: #{full_net_forward.1} parent=63 // pred_fallthru
          _
        // Predicated region
        $region73: #{full_net_forward.1} parent=63 // pred_check
          %p481 = pneg %p213
        $region74: #{full_net_forward.1} parent=63 // pred_check_branch
          %483 = sbr.rel (%p481) target = $region76
        $region75: #{full_net_forward.1} parent=63 // pred_region
          %s484 = sand.u32 %s198, 1
          %s485 = scalar_lea.sflag [#allocation9], %s484
          %s486 = sand.u32 %s198, 1
          %s487 = smul.addr %s486, 8
          %s488 = scalar_lea.vmem [#allocation8], %s487
          %490 = dma.done %s485, 128
        $region76: #{full_net_forward.1} parent=63 // pred_fallthru
          _
      $region64: #{full_net_forward.1} parent=5 // pred_fallthru
        _
    $region6: #{full_net_forward.1} parent=1 // loop_footer
      %s26 = sadd.s32 1, %s22
    $region7: #{full_net_forward.1} parent=1 // loop_footer_branch
      %21 = sbr.rel target = $region3
    $region8: #{full_net_forward.1} parent=1 // loop_exit
      _
    %491 = vsyncpa [#allocation3], 1
    %s492 = scalar_lea.sflag [#allocation3], 1
    %493 = vsyncpa %s492, 1
    %494 = vsyncpa [#allocation9], 1
    %s495 = scalar_lea.sflag [#allocation9], 1
    %496 = vsyncpa %s495, 1
    %497 = vsyncpa [#allocation4], 1
    %s498 = scalar_lea.sflag [#allocation4], 1
    %499 = vsyncpa %s498, 1
    %500 = vsyncpa [#allocation6], 1

</llo_original>
